<compile_context>
chip_gen: v7x
topology: tpu7x:2x2x1
jax: 0.10.0
libtpu: 0.0.40
codegen_flags: <defaults>
</compile_context>

<pallas_src>
import functools
import math

import jax
import jax.numpy as jnp
from jax.experimental import pallas as pl
from jax.experimental.pallas import tpu as pltpu


def _round_up(x, m):
    return (x + m - 1) // m * m


def _tpu_vmem_capacity_bytes():
    """Physical VMEM of the local chip; conservative (v7x) fallback."""
    try:
        info = pltpu.get_tpu_info()
        v = getattr(info, "vmem_capacity_bytes", None)
        if v:
            return int(v)
    except Exception:
        pass
    return 64 * 1024 * 1024


def _mmqa_kernel(x_ref, w0_ref, b0_ref, w1_ref, b1_ref, o_ref, *, eps,
                 approx_gelu):
    # dense0: [TB, H] @ [H, 2H] on the MXU, f32 accumulation, + bias.
    h = jnp.dot(x_ref[...], w0_ref[...], preferred_element_type=jnp.float32)
    h = h + b0_ref[...]

    # GELU. Exact erf matches the PyTorch module; the tanh approximation
    # routes the transcendental to the EUP (separate VLIW slot) which is the
    # win on v6e/v7x where the VALU saturates before the MXU.
    if approx_gelu:
        h = jax.nn.gelu(h, approximate=True)
    else:
        h = h * 0.5 * (1.0 + jax.lax.erf(h * (1.0 / math.sqrt(2.0))))

    # LayerNorm over the hidden dim (gamma/beta folded into w1/b1 by the
    # wrapper). Fused statistics: mean(h) and mean(h*h) have no serial
    # dependency, var = E[x^2] - mu^2 (clamped for f32 cancellation safety),
    # rsqrt -> EUP slot.
    mu = jnp.mean(h, axis=-1, keepdims=True)
    ex2 = jnp.mean(h * h, axis=-1, keepdims=True)
    var = jnp.maximum(ex2 - mu * mu, 0.0)
    hn = (h - mu) * jax.lax.rsqrt(var + eps)

    # dense1 (LayerNorm affine folded in): [TB, 2H] @ [2H, A_pad] + bias.
    out = jnp.dot(hn.astype(w1_ref.dtype), w1_ref[...],
                  preferred_element_type=jnp.float32)
    out = out + b1_ref[...]
    o_ref[...] = out.astype(o_ref.dtype)


def mmqa_head(x, w0, b0, gamma, beta, w1, b1, *, eps=1e-12, block_b=None,
              param_dtype=jnp.bfloat16, approx_gelu=False):
    """x: [B, H]; w0: [H, 2H]; b0/gamma/beta: [2H]; w1: [2H, A]; b1: [A].

    param_dtype: dtype of the matmul operands (default bf16; the head is
      weight-DMA bound so halving weight bytes is ~2x on the memory path).
      Accumulation is always f32. Pass jnp.float32 for bit-faithful math.
    approx_gelu: use the tanh GELU approximation (EUP) instead of exact erf.
    """
    B, H = x.shape
    H2 = w0.shape[1]
    A = w1.shape[1]
    out_dtype = x.dtype

    # ---- fold LayerNorm affine (gamma/beta) into dense1 ----------------------
    gamma32 = gamma.astype(jnp.float32)
    beta32 = beta.astype(jnp.float32)
    w1_f = gamma32[:, None] * w1.astype(jnp.float32)                 # [2H, A]
    b1_f = beta32 @ w1.astype(jnp.float32) + b1.astype(jnp.float32)  # [A]

    # ---- lane-dense output: pad answer dim to a multiple of 128 --------------
    A_pad = _round_up(A, 128)
    if A_pad != A:
        w1_f = jnp.pad(w1_f, ((0, 0), (0, A_pad - A)))
        b1_f = jnp.pad(b1_f, (0, A_pad - A))

    # ---- low-precision matmul operands (f32 accumulation preserved) ----------
    # TODO(synk): on v7x an fp8 (e4m3) weight path for w0/w1 would halve the
    # weight DMA again (v7x MXU takes bf16+fp8 natively); not enabled here.
    if param_dtype is not None:
        x = x.astype(param_dtype)
        w0 = w0.astype(param_dtype)
        w1_f = w1_f.astype(param_dtype)

    x_item = jnp.dtype(x.dtype).itemsize
    w_item = jnp.dtype(w0.dtype).itemsize
    out_item = jnp.dtype(out_dtype).itemsize

    # ---- VMEM budget ----------------------------------------------------------
    physical_vmem = _tpu_vmem_capacity_bytes()          # 128 MiB v5e/v6e, 64 MiB v7x
    vmem_cap = int(0.75 * physical_vmem)                # leave room for Mosaic scratch
    headroom = 2 * 1024 * 1024

    # resident (single-buffered) weights + biases
    weight_bytes = (H * H2 + H2 * A_pad) * w_item + (H2 + A_pad) * 4
    # per-batch-row bytes: double-buffered x/out tiles + f32 intermediates
    per_row_bytes = (2 * H * x_item            # x tile (2 pipeline buffers)
                     + 2 * A_pad * out_item    # out tile (2 pipeline buffers)
                     + 3 * H2 * 4              # h / centered / normalized (f32)
                     + A_pad * 4)              # f32 accumulator before cast

    avail = vmem_cap - weight_bytes - headroom
    if avail < 8 * per_row_bytes:
        # TODO(synk): when resident weights alone overflow VMEM (very large
        # HSIZE), stream w0/w1 in H2-chunks (dense0+gelu phase into a
        # [block_b, H2] scratch, LayerNorm+dense1 epilogue) instead of
        # shrinking block_b below MXU-efficient sizes.
        vmem_block_cap = 8
    else:
        vmem_block_cap = max(8, (avail // per_row_bytes) // 8 * 8)

    # ---- batch tiling ---------------------------------------------------------
    if block_b is None:
        bp = _round_up(B, 8)
        target = min(512, vmem_block_cap)
        n_steps = pl.cdiv(bp, target)
        # Megacore (v7x): only split a single full tile across both
        # TensorCores when each half is still compute-bound (>=256 rows);
        # otherwise the split just duplicates the resident-weight DMA.
        if n_steps == 1 and bp >= 512:
            n_steps = 2
        block_b = _round_up(pl.cdiv(bp, n_steps), 8)
    block_b = max(8, _round_up(block_b, 8))
    B_pad = _round_up(B, block_b)
    if B_pad != B:
        x = jnp.pad(x, ((0, B_pad - B), (0, 0)))

    b0_2d = b0.astype(jnp.float32).reshape(1, H2)
    b1_2d = b1_f.astype(jnp.float32).reshape(1, A_pad)

    grid = (B_pad // block_b,)

    # Always raise the scoped limit (v5e default is only 16 MiB); the 2x slack
    # covers the double-buffered-weight fallback and estimate error, and the
    # cap keeps us safely inside physical VMEM (48 MiB on a 64 MiB v7x part).
    est = weight_bytes + block_b * per_row_bytes + headroom
    vmem_limit = int(min(vmem_cap, max(2 * est, 16 * 1024 * 1024)))

    kernel = functools.partial(_mmqa_kernel, eps=eps, approx_gelu=approx_gelu)

    def _call(weight_pipeline_mode):
        wkw = ({} if weight_pipeline_mode is None
               else {"pipeline_mode": weight_pipeline_mode})
        grid_spec = pltpu.PrefetchScalarGridSpec(
            num_scalar_prefetch=0,
            grid=grid,
            in_specs=[
                pl.BlockSpec((block_b, H), lambda i: (i, 0)),          # x tile
                pl.BlockSpec((H, H2), lambda i: (0, 0), **wkw),        # w0
                pl.BlockSpec((1, H2), lambda i: (0, 0), **wkw),        # b0
                pl.BlockSpec((H2, A_pad), lambda i: (0, 0), **wkw),    # w1 (folded)
                pl.BlockSpec((1, A_pad), lambda i: (0, 0), **wkw),     # b1 (folded)
            ],
            out_specs=pl.BlockSpec((block_b, A_pad), lambda i: (i, 0)),
        )
        return pl.pallas_call(
            kernel,
            out_shape=jax.ShapeDtypeStruct((B_pad, A_pad), out_dtype),
            grid_spec=grid_spec,
            compiler_params=pltpu.CompilerParams(
                dimension_semantics=("parallel",),
                vmem_limit_bytes=vmem_limit),
        )(x, w0, b0_2d, w1_f, b1_2d)

    try:
        # Grid-invariant operands (index_map is constant): single-buffer them.
        out = _call(pl.Buffered(1))
    except Exception:
        # Fallback for JAX builds that reject Buffered(1) on pallas_call specs.
        out = _call(None)

    return out[:B, :A]


def mmqa_head_ref(x, w0, b0, gamma, beta, w1, b1, eps=1e-12):
    h = x @ w0 + b0
    h = h * 0.5 * (1.0 + jax.lax.erf(h / jnp.sqrt(2.0)))
    mu = jnp.mean(h, axis=-1, keepdims=True)
    var = jnp.mean((h - mu) ** 2, axis=-1, keepdims=True)
    hn = (h - mu) / jnp.sqrt(var + eps)
    hn = hn * gamma + beta
    return hn @ w1 + b1


if __name__ == "__main__":
    # Small shapes implied by the module: HSIZE=32, ans_size=16, batch=8.
    B, HSIZE, ANS = 8, 32, 16
    key = jax.random.PRNGKey(0)
    kx, k0, kb0, k1, kb1, kg, kbt = jax.random.split(key, 7)

    x = jax.random.normal(kx, (B, HSIZE), dtype=jnp.float32)
    # Deterministic synthetic parameters (nn.Linear-like scales), stored
    # already transposed as [in, out].
    w0 = jax.random.normal(k0, (HSIZE, 2 * HSIZE), dtype=jnp.float32) * (1.0 / math.sqrt(HSIZE))
    b0 = jax.random.normal(kb0, (2 * HSIZE,), dtype=jnp.float32) * 0.01
    gamma = 1.0 + 0.05 * jax.random.normal(kg, (2 * HSIZE,), dtype=jnp.float32)
    beta = 0.05 * jax.random.normal(kbt, (2 * HSIZE,), dtype=jnp.float32)
    w1 = jax.random.normal(k1, (2 * HSIZE, ANS), dtype=jnp.float32) * (1.0 / math.sqrt(2 * HSIZE))
    b1 = jax.random.normal(kb1, (ANS,), dtype=jnp.float32) * 0.01

    ref = mmqa_head_ref(x, w0, b0.reshape(1, -1), gamma.reshape(1, -1),
                        beta.reshape(1, -1), w1, b1.reshape(1, -1))

    # f32-operand path (strict numerical check, exact-erf GELU).
    out_f32 = mmqa_head(x, w0, b0, gamma, beta, w1, b1, param_dtype=jnp.float32)
    out_f32 = jax.block_until_ready(out_f32)
    assert out_f32.shape == (B, ANS)
    assert jnp.allclose(out_f32, ref, atol=1e-4, rtol=1e-4), "f32 mismatch vs reference"

    # Default path: bf16 matmul operands, f32 accumulation (looser tolerance).
    out_bf16 = mmqa_head(x, w0, b0, gamma, beta, w1, b1)
    out_bf16 = jax.block_until_ready(out_bf16)
    assert out_bf16.shape == (B, ANS)
    assert jnp.allclose(out_bf16, ref, atol=5e-2, rtol=5e-2), "bf16 mismatch vs reference"

    # tanh-GELU (EUP) path, f32 operands — approximation tolerance vs erf ref.
    out_tanh = mmqa_head(x, w0, b0, gamma, beta, w1, b1,
                         param_dtype=jnp.float32, approx_gelu=True)
    out_tanh = jax.block_until_ready(out_tanh)
    assert out_tanh.shape == (B, ANS)
    assert jnp.allclose(out_tanh, ref, atol=5e-2, rtol=5e-2), "tanh-gelu mismatch vs reference"

    print("KERNEL_OK")
</pallas_src>

<mosaic_0001>
module attributes {stable_mosaic.version = 11 : i64} {
  func.func @_mmqa_kernel(%arg0: i32, %arg1: memref<8x32xf32, #tpu.memory_space<vmem>>, %arg2: memref<32x64xf32, #tpu.memory_space<vmem>>, %arg3: memref<1x64xf32, #tpu.memory_space<vmem>>, %arg4: memref<64x128xf32, #tpu.memory_space<vmem>>, %arg5: memref<1x128xf32, #tpu.memory_space<vmem>>, %arg6: memref<8x128xf32, #tpu.memory_space<vmem>>) attributes {dimension_semantics = [#tpu.dimension_semantics<parallel>], iteration_bounds = array<i64: 1>, scalar_prefetch = 0 : i64, scratch_operands = 0 : i64, tpu.core_type = #tpu.core_type<tc>, window_params = [{transform_indices = @transform_0, window_bounds = array<i64: 8, 32>}, {pipeline_mode = #tpu.pipeline_mode<synchronous>, transform_indices = @transform_1, window_bounds = array<i64: 32, 64>}, {pipeline_mode = #tpu.pipeline_mode<synchronous>, transform_indices = @transform_2, window_bounds = array<i64: 1, 64>}, {pipeline_mode = #tpu.pipeline_mode<synchronous>, transform_indices = @transform_3, window_bounds = array<i64: 64, 128>}, {pipeline_mode = #tpu.pipeline_mode<synchronous>, transform_indices = @transform_4, window_bounds = array<i64: 1, 128>}, {transform_indices = @transform_5, window_bounds = array<i64: 8, 128>}]} {
    %c0 = arith.constant 0 : index
    %c0_0 = arith.constant 0 : index
    %0 = vector.load %arg1[%c0, %c0_0] : memref<8x32xf32, #tpu.memory_space<vmem>>, vector<8x32xf32>
    %c0_1 = arith.constant 0 : index
    %c0_2 = arith.constant 0 : index
    %1 = vector.load %arg2[%c0_1, %c0_2] : memref<32x64xf32, #tpu.memory_space<vmem>>, vector<32x64xf32>
    %cst = arith.constant dense<0.000000e+00> : vector<8x64xf32>
    %2 = tpu.matmul %0, %1, %cst {dimension_numbers = #tpu.dot_dimension_numbers<[1], [0], [0], [1], [0, 0, 1, 1], [], []>} : vector<8x32xf32>, vector<32x64xf32>, vector<8x64xf32> -> vector<8x64xf32>
    %c0_3 = arith.constant 0 : index
    %c0_4 = arith.constant 0 : index
    %3 = vector.load %arg3[%c0_3, %c0_4] : memref<1x64xf32, #tpu.memory_space<vmem>>, vector<1x64xf32>
    %4 = vector.broadcast %3 : vector<1x64xf32> to vector<8x64xf32>
    %5 = arith.addf %2, %4 : vector<8x64xf32>
    %cst_5 = arith.constant 5.000000e-01 : f32
    %6 = vector.broadcast %cst_5 : f32 to vector<8x64xf32>
    %7 = arith.mulf %5, %6 : vector<8x64xf32>
    %cst_6 = arith.constant 0.707106769 : f32
    %8 = vector.broadcast %cst_6 : f32 to vector<8x64xf32>
    %9 = arith.mulf %5, %8 : vector<8x64xf32>
    %10 = math.erf %9 : vector<8x64xf32>
    %cst_7 = arith.constant 1.000000e+00 : f32
    %11 = vector.broadcast %cst_7 : f32 to vector<8x64xf32>
    %12 = arith.addf %11, %10 : vector<8x64xf32>
    %13 = arith.mulf %7, %12 : vector<8x64xf32>
    %cst_8 = arith.constant dense<0.000000e+00> : vector<8xf32>
    %14 = vector.multi_reduction <add>, %13, %cst_8 [1] : vector<8x64xf32> to vector<8xf32>
    %15 = vector.shape_cast %14 : vector<8xf32> to vector<8x1xf32>
    %cst_9 = arith.constant 6.400000e+01 : f32
    %16 = vector.broadcast %cst_9 : f32 to vector<8x1xf32>
    %17 = arith.divf %15, %16 : vector<8x1xf32>
    %18 = arith.mulf %13, %13 : vector<8x64xf32>
    %cst_10 = arith.constant dense<0.000000e+00> : vector<8xf32>
    %19 = vector.multi_reduction <add>, %18, %cst_10 [1] : vector<8x64xf32> to vector<8xf32>
    %20 = vector.shape_cast %19 : vector<8xf32> to vector<8x1xf32>
    %cst_11 = arith.constant 6.400000e+01 : f32
    %21 = vector.broadcast %cst_11 : f32 to vector<8x1xf32>
    %22 = arith.divf %20, %21 : vector<8x1xf32>
    %23 = arith.mulf %17, %17 : vector<8x1xf32>
    %24 = arith.subf %22, %23 : vector<8x1xf32>
    %cst_12 = arith.constant 0.000000e+00 : f32
    %25 = vector.broadcast %cst_12 : f32 to vector<8x1xf32>
    %26 = arith.maximumf %24, %25 : vector<8x1xf32>
    %27 = vector.broadcast %17 : vector<8x1xf32> to vector<8x64xf32>
    %28 = arith.subf %13, %27 : vector<8x64xf32>
    %cst_13 = arith.constant 9.99999996E-13 : f32
    %29 = vector.broadcast %cst_13 : f32 to vector<8x1xf32>
    %30 = arith.addf %26, %29 : vector<8x1xf32>
    %31 = math.rsqrt %30 : vector<8x1xf32>
    %32 = vector.broadcast %31 : vector<8x1xf32> to vector<8x64xf32>
    %33 = arith.mulf %28, %32 : vector<8x64xf32>
    %c0_14 = arith.constant 0 : index
    %c0_15 = arith.constant 0 : index
    %34 = vector.load %arg4[%c0_14, %c0_15] : memref<64x128xf32, #tpu.memory_space<vmem>>, vector<64x128xf32>
    %cst_16 = arith.constant dense<0.000000e+00> : vector<8x128xf32>
    %35 = tpu.matmul %33, %34, %cst_16 {dimension_numbers = #tpu.dot_dimension_numbers<[1], [0], [0], [1], [0, 0, 1, 1], [], []>} : vector<8x64xf32>, vector<64x128xf32>, vector<8x128xf32> -> vector<8x128xf32>
    %c0_17 = arith.constant 0 : index
    %c0_18 = arith.constant 0 : index
    %36 = vector.load %arg5[%c0_17, %c0_18] : memref<1x128xf32, #tpu.memory_space<vmem>>, vector<1x128xf32>
    %37 = vector.broadcast %36 : vector<1x128xf32> to vector<8x128xf32>
    %38 = arith.addf %35, %37 : vector<8x128xf32>
    %c0_19 = arith.constant 0 : index
    %c0_20 = arith.constant 0 : index
    %39 = vector.load %arg6[%c0_19, %c0_20] : memref<8x128xf32, #tpu.memory_space<vmem>>, vector<8x128xf32>
    tpu.vector_store %arg6[%c0_19, %c0_20], %38 {strides = array<i32>} : memref<8x128xf32, #tpu.memory_space<vmem>>, vector<8x128xf32>,
    return
  }
  func.func @transform_0(%arg0: i32) -> (i32, i32) {
    %c0_i32 = arith.constant 0 : i32
    %c0_i32_0 = arith.constant 0 : i32
    return %arg0, %c0_i32 : i32, i32
  }
  func.func @transform_1(%arg0: i32) -> (i32, i32) {
    %c0_i32 = arith.constant 0 : i32
    %c0_i32_0 = arith.constant 0 : i32
    %c0_i32_1 = arith.constant 0 : i32
    return %c0_i32, %c0_i32_0 : i32, i32
  }
  func.func @transform_2(%arg0: i32) -> (i32, i32) {
    %c0_i32 = arith.constant 0 : i32
    %c0_i32_0 = arith.constant 0 : i32
    %c0_i32_1 = arith.constant 0 : i32
    return %c0_i32, %c0_i32_0 : i32, i32
  }
  func.func @transform_3(%arg0: i32) -> (i32, i32) {
    %c0_i32 = arith.constant 0 : i32
    %c0_i32_0 = arith.constant 0 : i32
    %c0_i32_1 = arith.constant 0 : i32
    return %c0_i32, %c0_i32_0 : i32, i32
  }
  func.func @transform_4(%arg0: i32) -> (i32, i32) {
    %c0_i32 = arith.constant 0 : i32
    %c0_i32_0 = arith.constant 0 : i32
    %c0_i32_1 = arith.constant 0 : i32
    return %c0_i32, %c0_i32_0 : i32, i32
  }
  func.func @transform_5(%arg0: i32) -> (i32, i32) {
    %c0_i32 = arith.constant 0 : i32
    %c0_i32_0 = arith.constant 0 : i32
    return %arg0, %c0_i32 : i32, i32
  }
}

module attributes {stable_mosaic.version = 11 : i64} {
  func.func @_mmqa_kernel(%arg0: i32, %arg1: memref<8x32xf32, #tpu.memory_space<vmem>>, %arg2: memref<32x64xf32, #tpu.memory_space<vmem>>, %arg3: memref<1x64xf32, #tpu.memory_space<vmem>>, %arg4: memref<64x128xf32, #tpu.memory_space<vmem>>, %arg5: memref<1x128xf32, #tpu.memory_space<vmem>>, %arg6: memref<8x128xf32, #tpu.memory_space<vmem>>) attributes {dimension_semantics = [#tpu.dimension_semantics<parallel>], iteration_bounds = array<i64: 1>, scalar_prefetch = 0 : i64, scratch_operands = 0 : i64, tpu.core_type = #tpu.core_type<tc>, window_params = [{transform_indices = @transform_0, window_bounds = array<i64: 8, 32>}, {pipeline_mode = #tpu.pipeline_mode<synchronous>, transform_indices = @transform_1, window_bounds = array<i64: 32, 64>}, {pipeline_mode = #tpu.pipeline_mode<synchronous>, transform_indices = @transform_2, window_bounds = array<i64: 1, 64>}, {pipeline_mode = #tpu.pipeline_mode<synchronous>, transform_indices = @transform_3, window_bounds = array<i64: 64, 128>}, {pipeline_mode = #tpu.pipeline_mode<synchronous>, transform_indices = @transform_4, window_bounds = array<i64: 1, 128>}, {transform_indices = @transform_5, window_bounds = array<i64: 8, 128>}]} {
    %c0 = arith.constant 0 : index
    %c0_0 = arith.constant 0 : index
    %0 = vector.load %arg1[%c0, %c0_0] : memref<8x32xf32, #tpu.memory_space<vmem>>, vector<8x32xf32>
    %c0_1 = arith.constant 0 : index
    %c0_2 = arith.constant 0 : index
    %1 = vector.load %arg2[%c0_1, %c0_2] : memref<32x64xf32, #tpu.memory_space<vmem>>, vector<32x64xf32>
    %cst = arith.constant dense<0.000000e+00> : vector<8x64xf32>
    %2 = tpu.matmul %0, %1, %cst {dimension_numbers = #tpu.dot_dimension_numbers<[1], [0], [0], [1], [0, 0, 1, 1], [], []>} : vector<8x32xf32>, vector<32x64xf32>, vector<8x64xf32> -> vector<8x64xf32>
    %c0_3 = arith.constant 0 : index
    %c0_4 = arith.constant 0 : index
    %3 = vector.load %arg3[%c0_3, %c0_4] : memref<1x64xf32, #tpu.memory_space<vmem>>, vector<1x64xf32>
    %4 = vector.broadcast %3 : vector<1x64xf32> to vector<8x64xf32>
    %5 = arith.addf %2, %4 : vector<8x64xf32>
    %cst_5 = arith.constant 5.000000e-01 : f32
    %6 = vector.broadcast %cst_5 : f32 to vector<8x64xf32>
    %7 = arith.mulf %5, %6 : vector<8x64xf32>
    %cst_6 = arith.constant 0.707106769 : f32
    %8 = vector.broadcast %cst_6 : f32 to vector<8x64xf32>
    %9 = arith.mulf %5, %8 : vector<8x64xf32>
    %10 = math.erf %9 : vector<8x64xf32>
    %cst_7 = arith.constant 1.000000e+00 : f32
    %11 = vector.broadcast %cst_7 : f32 to vector<8x64xf32>
    %12 = arith.addf %11, %10 : vector<8x64xf32>
    %13 = arith.mulf %7, %12 : vector<8x64xf32>
    %cst_8 = arith.constant dense<0.000000e+00> : vector<8xf32>
    %14 = vector.multi_reduction <add>, %13, %cst_8 [1] : vector<8x64xf32> to vector<8xf32>
    %15 = vector.shape_cast %14 : vector<8xf32> to vector<8x1xf32>
    %cst_9 = arith.constant 6.400000e+01 : f32
    %16 = vector.broadcast %cst_9 : f32 to vector<8x1xf32>
    %17 = arith.divf %15, %16 : vector<8x1xf32>
    %18 = arith.mulf %13, %13 : vector<8x64xf32>
    %cst_10 = arith.constant dense<0.000000e+00> : vector<8xf32>
    %19 = vector.multi_reduction <add>, %18, %cst_10 [1] : vector<8x64xf32> to vector<8xf32>
    %20 = vector.shape_cast %19 : vector<8xf32> to vector<8x1xf32>
    %cst_11 = arith.constant 6.400000e+01 : f32
    %21 = vector.broadcast %cst_11 : f32 to vector<8x1xf32>
    %22 = arith.divf %20, %21 : vector<8x1xf32>
    %23 = arith.mulf %17, %17 : vector<8x1xf32>
    %24 = arith.subf %22, %23 : vector<8x1xf32>
    %cst_12 = arith.constant 0.000000e+00 : f32
    %25 = vector.broadcast %cst_12 : f32 to vector<8x1xf32>
    %26 = arith.maximumf %24, %25 : vector<8x1xf32>
    %27 = vector.broadcast %17 : vector<8x1xf32> to vector<8x64xf32>
    %28 = arith.subf %13, %27 : vector<8x64xf32>
    %cst_13 = arith.constant 9.99999996E-13 : f32
    %29 = vector.broadcast %cst_13 : f32 to vector<8x1xf32>
    %30 = arith.addf %26, %29 : vector<8x1xf32>
    %31 = math.rsqrt %30 : vector<8x1xf32>
    %32 = vector.broadcast %31 : vector<8x1xf32> to vector<8x64xf32>
    %33 = arith.mulf %28, %32 : vector<8x64xf32>
    %c0_14 = arith.constant 0 : index
    %c0_15 = arith.constant 0 : index
    %34 = vector.load %arg4[%c0_14, %c0_15] : memref<64x128xf32, #tpu.memory_space<vmem>>, vector<64x128xf32>
    %cst_16 = arith.constant dense<0.000000e+00> : vector<8x128xf32>
    %35 = tpu.matmul %33, %34, %cst_16 {dimension_numbers = #tpu.dot_dimension_numbers<[1], [0], [0], [1], [0, 0, 1, 1], [], []>} : vector<8x64xf32>, vector<64x128xf32>, vector<8x128xf32> -> vector<8x128xf32>
    %c0_17 = arith.constant 0 : index
    %c0_18 = arith.constant 0 : index
    %36 = vector.load %arg5[%c0_17, %c0_18] : memref<1x128xf32, #tpu.memory_space<vmem>>, vector<1x128xf32>
    %37 = vector.broadcast %36 : vector<1x128xf32> to vector<8x128xf32>
    %38 = arith.addf %35, %37 : vector<8x128xf32>
    %c0_19 = arith.constant 0 : index
    %c0_20 = arith.constant 0 : index
    %39 = vector.load %arg6[%c0_19, %c0_20] : memref<8x128xf32, #tpu.memory_space<vmem>>, vector<8x128xf32>
    tpu.vector_store %arg6[%c0_19, %c0_20], %38 {strides = array<i32>} : memref<8x128xf32, #tpu.memory_space<vmem>>, vector<8x128xf32>,
    return
  }
  func.func @transform_0(%arg0: i32) -> (i32, i32) {
    %c0_i32 = arith.constant 0 : i32
    %c0_i32_0 = arith.constant 0 : i32
    return %arg0, %c0_i32 : i32, i32
  }
  func.func @transform_1(%arg0: i32) -> (i32, i32) {
    %c0_i32 = arith.constant 0 : i32
    %c0_i32_0 = arith.constant 0 : i32
    %c0_i32_1 = arith.constant 0 : i32
    return %c0_i32, %c0_i32_0 : i32, i32
  }
  func.func @transform_2(%arg0: i32) -> (i32, i32) {
    %c0_i32 = arith.constant 0 : i32
    %c0_i32_0 = arith.constant 0 : i32
    %c0_i32_1 = arith.constant 0 : i32
    return %c0_i32, %c0_i32_0 : i32, i32
  }
  func.func @transform_3(%arg0: i32) -> (i32, i32) {
    %c0_i32 = arith.constant 0 : i32
    %c0_i32_0 = arith.constant 0 : i32
    %c0_i32_1 = arith.constant 0 : i32
    return %c0_i32, %c0_i32_0 : i32, i32
  }
  func.func @transform_4(%arg0: i32) -> (i32, i32) {
    %c0_i32 = arith.constant 0 : i32
    %c0_i32_0 = arith.constant 0 : i32
    %c0_i32_1 = arith.constant 0 : i32
    return %c0_i32, %c0_i32_0 : i32, i32
  }
  func.func @transform_5(%arg0: i32) -> (i32, i32) {
    %c0_i32 = arith.constant 0 : i32
    %c0_i32_0 = arith.constant 0 : i32
    return %arg0, %c0_i32 : i32, i32
  }
}

</mosaic_0001>

<llo_original>
// kernel: tpu_custom_call.1
$region0: #{tpu_custom_call.1}
  #allocation0 [shape = 'u32[]', space=smem, size = 0x4, offset = 0x4, fixed_abs, tag = 'smem constant byte address 0x4 - core index']
  #allocation1 [shape = 'u32[144,128]{1,0:T(1,128)}', space=vmem, size = 0x12000, scoped, tag = 'internal scratch']
  %s0 = inlined_call_operand.hbm [shape: f32[8,32], index: 0, kind: input, shape index: {}]
  %s1 = inlined_call_operand.hbm [shape: f32[32,64], index: 1, kind: input, shape index: {}]
  %s2 = inlined_call_operand.vmem [shape: f32[1,64], index: 2, kind: input, shape index: {}]
  %s3 = inlined_call_operand.hbm [shape: f32[64,128], index: 3, kind: input, shape index: {}]
  %s4 = inlined_call_operand.vmem [shape: f32[1,128], index: 4, kind: input, shape index: {}]
  %s5 = inlined_call_operand.hbm [shape: f32[8,128], index: 5, kind: output, shape index: {}]
  %s6 = sld [smem:[#allocation0]]
  $region42: #{tpu_custom_call.1} parent=0
    _
  %s8 = ssub.s32 1, %s6
  %s9 = scalar_select 0, %s8, %s6
  $region1: #{tpu_custom_call.1} parent=0
    #allocation2 [shape = 'u8[4096]{0}', space=vmem, size = 0x1000, scoped, tag = 'input window, operand 0, single buffered']
    #allocation3 [shape = 's32[1]{0}', space=sflag, size = 0x4, scoped, tag = 'scoped memory for tpu_custom_call.1']
    #allocation4 [shape = 's32[1]{0}', space=sflag, size = 0x4, scoped, tag = 'scoped memory for tpu_custom_call.1']
    #allocation5 [shape = 'u8[16384]{0}', space=vmem, size = 0x4000, scoped, tag = 'input window, operand 1, single buffered']
    #allocation6 [shape = 's32[1]{0}', space=sflag, size = 0x4, scoped, tag = 'scoped memory for tpu_custom_call.1']
    #allocation7 [shape = 'u8[32768]{0}', space=vmem, size = 0x8000, scoped, tag = 'input window, operand 3, single buffered']
    #allocation8 [shape = 'u8[4096]{0}', space=vmem, size = 0x1000, scoped, tag = 'output window, operand 0, single buffered']
    %10 = vsyncpa [#allocation3], 0
    %11 = vsyncpa [#allocation6], 0
    %12 = vsyncpa [#allocation4], 0
    // Predicated region
    $region2: #{tpu_custom_call.1} parent=1 // pred_check
      _
    $region3: #{tpu_custom_call.1} parent=1 // pred_check_branch
      %14 = sbr.rel (0) target = $region5
    $region4: #{tpu_custom_call.1} parent=1 // pred_region
      %s16 = ssub.s32 128, 128
      %17 = vsyncadd [#allocation3], %s16
      %s19 = sshll.u32 [#allocation2], 4
      %s20 = int_to_ptr.vmem [resolvable:$true] %s19
      %22 = dma.hbm_to_vmem [thread:$0]  %s0, 128, %s20, [#allocation3]
    $region5: #{tpu_custom_call.1} parent=1 // pred_fallthru
      _
    // Predicated region
    $region6: #{tpu_custom_call.1} parent=1 // pred_check
      _
    $region7: #{tpu_custom_call.1} parent=1 // pred_check_branch
      %24 = sbr.rel (0) target = $region9
    $region8: #{tpu_custom_call.1} parent=1 // pred_region
      %s26 = ssub.s32 512, 512
      %27 = vsyncadd [#allocation6], %s26
      %s28 = sshll.u32 [#allocation5], 4
      %s29 = int_to_ptr.vmem [resolvable:$true] %s28
      %34 = dma.hbm_to_vmem [thread:$0]  %s1, 512, %s29, [#allocation6], 128, 128, 8
    $region9: #{tpu_custom_call.1} parent=1 // pred_fallthru
      _
    // Predicated region
    $region10: #{tpu_custom_call.1} parent=1 // pred_check
      _
    $region11: #{tpu_custom_call.1} parent=1 // pred_check_branch
      %36 = sbr.rel (0) target = $region13
    $region12: #{tpu_custom_call.1} parent=1 // pred_region
      _
    $region13: #{tpu_custom_call.1} parent=1 // pred_fallthru
      _
    // Predicated region
    $region14: #{tpu_custom_call.1} parent=1 // pred_check
      _
    $region15: #{tpu_custom_call.1} parent=1 // pred_check_branch
      %38 = sbr.rel (0) target = $region17
    $region16: #{tpu_custom_call.1} parent=1 // pred_region
      %s40 = ssub.s32 1024, 1024
      %41 = vsyncadd [#allocation6], %s40
      %s42 = sshll.u32 [#allocation7], 4
      %s43 = int_to_ptr.vmem [resolvable:$true] %s42
      %48 = dma.hbm_to_vmem [thread:$0]  %s3, 1024, %s43, [#allocation6], 128, 128, 8
    $region17: #{tpu_custom_call.1} parent=1 // pred_fallthru
      _
    // Predicated region
    $region18: #{tpu_custom_call.1} parent=1 // pred_check
      _
    $region19: #{tpu_custom_call.1} parent=1 // pred_check_branch
      %50 = sbr.rel (0) target = $region21
    $region20: #{tpu_custom_call.1} parent=1 // pred_region
      _
    $region21: #{tpu_custom_call.1} parent=1 // pred_fallthru
      _
    // Predicated region
    $region22: #{tpu_custom_call.1} parent=1 // pred_check
      _
    $region23: #{tpu_custom_call.1} parent=1 // pred_check_branch
      %52 = sbr.rel (0) target = $region25
    $region24: #{tpu_custom_call.1} parent=1 // pred_region
      %53 = dma.done [#allocation3], 128
    $region25: #{tpu_custom_call.1} parent=1 // pred_fallthru
      _
    // Predicated region
    $region26: #{tpu_custom_call.1} parent=1 // pred_check
      _
    $region27: #{tpu_custom_call.1} parent=1 // pred_check_branch
      %55 = sbr.rel (0) target = $region29
    $region28: #{tpu_custom_call.1} parent=1 // pred_region
      %56 = dma.done [#allocation6], 512
    $region29: #{tpu_custom_call.1} parent=1 // pred_fallthru
      _
    // Predicated region
    $region30: #{tpu_custom_call.1} parent=1 // pred_check
      _
    $region31: #{tpu_custom_call.1} parent=1 // pred_check_branch
      %58 = sbr.rel (0) target = $region33
    $region32: #{tpu_custom_call.1} parent=1 // pred_region
      %59 = dma.done [#allocation6], 1024
    $region33: #{tpu_custom_call.1} parent=1 // pred_fallthru
      _
    %v60 = vld [vmem:[#allocation2] sm:$0xff]
    %v61 = vld [vmem:[#allocation5] sm:$0xff]
    %v62 = vld [vmem:[#allocation5 + $0x8] sm:$0xff]
    %v63 = vld [vmem:[#allocation5 + $0x10] sm:$0xff]
    %v64 = vld [vmem:[#allocation5 + $0x18] sm:$0xff]
    %v65 = vld [vmem:[%s2] sm:$0x1]
    %v67 = vlaneseq
    %v68 = vshrl.u32 %v67, 7
    %v69 = vsub.s32 0, %v68
    %v70 = vrot.slane %v65, %v69
    %vm72 = vcmask 261120
    %v74 = vsel %vm72, %v60, 0
    %76 = vmatprep.subr.mxu0 0.0
    %77 = vmatpush1.msra.mxu0 %v61
    %78 = vmatprep.subr.mxu0 0.0
    %79 = vmatpush1.msra.mxu0 %v62
    %80 = vmatprep.subr.mxu0 0.0
    %81 = vmatpush1.msra.mxu0 %v63
    %82 = vmatprep.subr.mxu0 0.0
    %83 = vmatpush1.msra.mxu0 %v64
    %84 = vmatprep.subr.mxu0 0.0
    %85 = vmatpush1.msra.mxu0 0.0
    %86 = vmatprep.subr.mxu0 0.0
    %87 = vmatpush1.msra.mxu0 0.0
    %88 = vmatprep.subr.mxu0 0.0
    %89 = vmatpush1.msra.mxu0 0.0
    %90 = vmatprep.subr.mxu0 0.0
    %91 = vmatpush1.msra.mxu0 0.0
    %92 = vmatprep.subr.mxu0 0.0
    %93 = vmatpush1.msra.mxu0 0.0
    %94 = vmatprep.subr.mxu0 0.0
    %95 = vmatpush1.msra.mxu0 0.0
    %96 = vmatprep.subr.mxu0 0.0
    %97 = vmatpush1.msra.mxu0 0.0
    %98 = vmatprep.subr.mxu0 0.0
    %99 = vmatpush1.msra.mxu0 0.0
    %100 = vmatprep.subr.mxu0 0.0
    %101 = vmatpush1.msra.mxu0 0.0
    %102 = vmatprep.subr.mxu0 0.0
    %103 = vmatpush1.msra.mxu0 0.0
    %104 = vmatprep.subr.mxu0 0.0
    %105 = vmatpush1.msra.mxu0 0.0
    %106 = vmatprep.subr.mxu0 0.0
    %107 = vmatpush1.msra.mxu0 0.0
    %108 = vmatprep.subr.mxu0 0.0
    %109 = vmatpush1.msra.mxu0 0.0
    %110 = vmatprep.subr.mxu0 0.0
    %111 = vmatpush1.msra.mxu0 0.0
    %112 = vmatprep.subr.mxu0 0.0
    %113 = vmatpush1.msra.mxu0 0.0
    %114 = vmatprep.subr.mxu0 0.0
    %115 = vmatpush1.msra.mxu0 0.0
    %116 = vmatprep.subr.mxu0 0.0
    %117 = vmatpush1.msra.mxu0 0.0
    %118 = vmatprep.subr.mxu0 0.0
    %119 = vmatpush1.msra.mxu0 0.0
    %120 = vmatprep.subr.mxu0 0.0
    %121 = vmatpush1.msra.mxu0 0.0
    %122 = vmatprep.subr.mxu0 0.0
    %123 = vmatpush1.msra.mxu0 0.0
    %124 = vmatprep.subr.mxu0 0.0
    %125 = vmatpush1.msra.mxu0 0.0
    %126 = vmatprep.subr.mxu0 0.0
    %127 = vmatpush1.msra.mxu0 0.0
    %128 = vmatprep.subr.mxu0 0.0
    %129 = vmatpush1.msra.mxu0 0.0
    %130 = vmatprep.subr.mxu0 0.0
    %131 = vmatpush1.msra.mxu0 0.0
    %132 = vmatprep.subr.mxu0 0.0
    %133 = vmatpush1.msra.mxu0 0.0
    %134 = vmatprep.subr.mxu0 0.0
    %135 = vmatpush1.msra.mxu0 0.0
    %136 = vmatprep.subr.mxu0 0.0
    %137 = vmatpush1.msra.mxu0 0.0
    %138 = vmatprep.subr.mxu0 0.0
    %139 = vmatpush1.msra.mxu0 0.0
    %140 = vmatprep.mubr.f32.mxu0 0.0
    %141 = vmatmul.mubr.f32.gmra.mrb[0].mxu0 %v74
    %v142 = vpop.f32.mrb[0].mxu0
    %v143 = vadd.f32 %v70, %v142
    %v144 = vpop.f32.mrb[0].mxu0
    %145 = vdwg.mxu0
    %v146 = vmul.f32 %v143, 0.5
    %v147 = vmul.f32 %v143, 0.70710677
    %v148 = verf.f32.pop %v147
    %v149 = vadd.f32 %v148, 1.0
    %v150 = vmul.f32 %v146, %v149
    %vm151 = vcmask 523264
    %v152 = vsel %vm151, %v150, 0.0
    %153 = vadd.xlane.f32.xlu0 %v152
    %v154 = vpop.xlane.xlu0 %153
    %v155 = vrcp.pop 64.0
    %v156 = vmul.f32 %v154, %v155
    %v157 = vmul.f32 %v150, %v150
    %v158 = vsel %vm151, %v157, 0.0
    %159 = vadd.xlane.f32.xlu0 %v158
    %v160 = vpop.xlane.xlu0 %159
    %v161 = vmul.f32 %v160, %v155
    %v162 = vmul.f32 %v156, %v156
    %v163 = vsub.f32 %v161, %v162
    %v164 = vmax.f32 %v163, 0.0
    %v165 = vsub.f32 %v150, %v156
    %v166 = vadd.f32 %v164, 1e-12
    %v167 = vrsqrt.pop %v166
    %v168 = vmul.f32 %v165, %v167
    %v169 = vld [vmem:[#allocation7] sm:$0xff]
    %v170 = vld [vmem:[#allocation7 + $0x8] sm:$0xff]
    %v171 = vld [vmem:[#allocation7 + $0x10] sm:$0xff]
    %v172 = vld [vmem:[#allocation7 + $0x18] sm:$0xff]
    %v173 = vld [vmem:[#allocation7 + $0x20] sm:$0xff]
    %v174 = vld [vmem:[#allocation7 + $0x28] sm:$0xff]
    %v175 = vld [vmem:[#allocation7 + $0x30] sm:$0xff]
    %v176 = vld [vmem:[#allocation7 + $0x38] sm:$0xff]
    %v177 = vld [vmem:[%s4] sm:$0x1]
    %v179 = vlaneseq
    %v180 = vshrl.u32 %v179, 7
    %v181 = vsub.s32 0, %v180
    %v182 = vrot.slane %v177, %v181
    %v185 = vsel %vm151, %v168, 0
    %187 = vmatprep.subr.mxu0 0.0
    %188 = vmatpush1.msra.mxu0 %v169
    %189 = vmatprep.subr.mxu0 0.0
    %190 = vmatpush1.msra.mxu0 %v170
    %191 = vmatprep.subr.mxu0 0.0
    %192 = vmatpush1.msra.mxu0 %v171
    %193 = vmatprep.subr.mxu0 0.0
    %194 = vmatpush1.msra.mxu0 %v172
    %195 = vmatprep.subr.mxu0 0.0
    %196 = vmatpush1.msra.mxu0 %v173
    %197 = vmatprep.subr.mxu0 0.0
    %198 = vmatpush1.msra.mxu0 %v174
    %199 = vmatprep.subr.mxu0 0.0
    %200 = vmatpush1.msra.mxu0 %v175
    %201 = vmatprep.subr.mxu0 0.0
    %202 = vmatpush1.msra.mxu0 %v176
    %203 = vmatprep.subr.mxu0 0.0
    %204 = vmatpush1.msra.mxu0 0.0
    %205 = vmatprep.subr.mxu0 0.0
    %206 = vmatpush1.msra.mxu0 0.0
    %207 = vmatprep.subr.mxu0 0.0
    %208 = vmatpush1.msra.mxu0 0.0
    %209 = vmatprep.subr.mxu0 0.0
    %210 = vmatpush1.msra.mxu0 0.0
    %211 = vmatprep.subr.mxu0 0.0
    %212 = vmatpush1.msra.mxu0 0.0
    %213 = vmatprep.subr.mxu0 0.0
    %214 = vmatpush1.msra.mxu0 0.0
    %215 = vmatprep.subr.mxu0 0.0
    %216 = vmatpush1.msra.mxu0 0.0
    %217 = vmatprep.subr.mxu0 0.0
    %218 = vmatpush1.msra.mxu0 0.0
    %219 = vmatprep.subr.mxu0 0.0
    %220 = vmatpush1.msra.mxu0 0.0
    %221 = vmatprep.subr.mxu0 0.0
    %222 = vmatpush1.msra.mxu0 0.0
    %223 = vmatprep.subr.mxu0 0.0
    %224 = vmatpush1.msra.mxu0 0.0
    %225 = vmatprep.subr.mxu0 0.0
    %226 = vmatpush1.msra.mxu0 0.0
    %227 = vmatprep.subr.mxu0 0.0
    %228 = vmatpush1.msra.mxu0 0.0
    %229 = vmatprep.subr.mxu0 0.0
    %230 = vmatpush1.msra.mxu0 0.0
    %231 = vmatprep.subr.mxu0 0.0
    %232 = vmatpush1.msra.mxu0 0.0
    %233 = vmatprep.subr.mxu0 0.0
    %234 = vmatpush1.msra.mxu0 0.0
    %235 = vmatprep.subr.mxu0 0.0
    %236 = vmatpush1.msra.mxu0 0.0
    %237 = vmatprep.subr.mxu0 0.0
    %238 = vmatpush1.msra.mxu0 0.0
    %239 = vmatprep.subr.mxu0 0.0
    %240 = vmatpush1.msra.mxu0 0.0
    %241 = vmatprep.subr.mxu0 0.0
    %242 = vmatpush1.msra.mxu0 0.0
    %243 = vmatprep.subr.mxu0 0.0
    %244 = vmatpush1.msra.mxu0 0.0
    %245 = vmatprep.subr.mxu0 0.0
    %246 = vmatpush1.msra.mxu0 0.0
    %247 = vmatprep.subr.mxu0 0.0
    %248 = vmatpush1.msra.mxu0 0.0
    %249 = vmatprep.subr.mxu0 0.0
    %250 = vmatpush1.msra.mxu0 0.0
    %251 = vmatprep.mubr.f32.mxu0 0.0
    %252 = vmatmul.mubr.f32.gmra.mrb[0].mxu0 %v185
    %v253 = vpop.f32.mrb[0].mxu0
    %v254 = vadd.f32 %v182, %v253
    %v255 = vpop.f32.mrb[0].mxu0
    %256 = vdwg.mxu0
    %257 = vst [vmem:[#allocation8] sm:$0xff] %v254
    // Predicated region
    $region34: #{tpu_custom_call.1} parent=1 // pred_check
      _
    $region35: #{tpu_custom_call.1} parent=1 // pred_check_branch
      %259 = sbr.rel (0) target = $region37
    $region36: #{tpu_custom_call.1} parent=1 // pred_region
      %s261 = ssub.s32 128, 128
      %262 = vsyncadd [#allocation4], %s261
      %s264 = sshll.u32 [#allocation8], 4
      %s265 = int_to_ptr.vmem [resolvable:$true] %s264
      %267 = dma.vmem_to_hbm [thread:$0]  %s265, 128, %s5, [#allocation4]
    $region37: #{tpu_custom_call.1} parent=1 // pred_fallthru
      _
    // Predicated region
    $region38: #{tpu_custom_call.1} parent=1 // pred_check
      _
    $region39: #{tpu_custom_call.1} parent=1 // pred_check_branch
      %269 = sbr.rel (0) target = $region41
    $region40: #{tpu_custom_call.1} parent=1 // pred_region
      %270 = dma.done [#allocation4], 128
    $region41: #{tpu_custom_call.1} parent=1 // pred_fallthru
      _
    %271 = vsyncpa [#allocation3], 1
    %272 = vsyncpa [#allocation6], 1
    %273 = vsyncpa [#allocation4], 1

// kernel: tpu_custom_call.1
$region0: #{tpu_custom_call.1}
  #allocation0 [shape = 'u32[]', space=smem, size = 0x4, offset = 0x4, fixed_abs, tag = 'smem constant byte address 0x4 - core index']
  #allocation1 [shape = 'u32[144,128]{1,0:T(1,128)}', space=vmem, size = 0x12000, scoped, tag = 'internal scratch']
  %s0 = inlined_call_operand.hbm [shape: f32[8,32], index: 0, kind: input, shape index: {}]
  %s1 = inlined_call_operand.hbm [shape: f32[32,64], index: 1, kind: input, shape index: {}]
  %s2 = inlined_call_operand.vmem [shape: f32[1,64], index: 2, kind: input, shape index: {}]
  %s3 = inlined_call_operand.hbm [shape: f32[64,128], index: 3, kind: input, shape index: {}]
  %s4 = inlined_call_operand.vmem [shape: f32[1,128], index: 4, kind: input, shape index: {}]
  %s5 = inlined_call_operand.hbm [shape: f32[8,128], index: 5, kind: output, shape index: {}]
  %s6 = sld [smem:[#allocation0]]
  $region42: #{tpu_custom_call.1} parent=0
    _
  %s8 = ssub.s32 1, %s6
  %s9 = scalar_select 0, %s8, %s6
  $region1: #{tpu_custom_call.1} parent=0
    #allocation2 [shape = 'u8[4096]{0}', space=vmem, size = 0x1000, scoped, tag = 'input window, operand 0, single buffered']
    #allocation3 [shape = 's32[1]{0}', space=sflag, size = 0x4, scoped, tag = 'scoped memory for tpu_custom_call.1']
    #allocation4 [shape = 's32[1]{0}', space=sflag, size = 0x4, scoped, tag = 'scoped memory for tpu_custom_call.1']
    #allocation5 [shape = 'u8[16384]{0}', space=vmem, size = 0x4000, scoped, tag = 'input window, operand 1, single buffered']
    #allocation6 [shape = 's32[1]{0}', space=sflag, size = 0x4, scoped, tag = 'scoped memory for tpu_custom_call.1']
    #allocation7 [shape = 'u8[32768]{0}', space=vmem, size = 0x8000, scoped, tag = 'input window, operand 3, single buffered']
    #allocation8 [shape = 'u8[4096]{0}', space=vmem, size = 0x1000, scoped, tag = 'output window, operand 0, single buffered']
    %10 = vsyncpa [#allocation3], 0
    %11 = vsyncpa [#allocation6], 0
    %12 = vsyncpa [#allocation4], 0
    // Predicated region
    $region2: #{tpu_custom_call.1} parent=1 // pred_check
      _
    $region3: #{tpu_custom_call.1} parent=1 // pred_check_branch
      %14 = sbr.rel (0) target = $region5
    $region4: #{tpu_custom_call.1} parent=1 // pred_region
      %s16 = ssub.s32 128, 128
      %17 = vsyncadd [#allocation3], %s16
      %s19 = sshll.u32 [#allocation2], 4
      %s20 = int_to_ptr.vmem [resolvable:$true] %s19
      %22 = dma.hbm_to_vmem [thread:$0]  %s0, 128, %s20, [#allocation3]
    $region5: #{tpu_custom_call.1} parent=1 // pred_fallthru
      _
    // Predicated region
    $region6: #{tpu_custom_call.1} parent=1 // pred_check
      _
    $region7: #{tpu_custom_call.1} parent=1 // pred_check_branch
      %24 = sbr.rel (0) target = $region9
    $region8: #{tpu_custom_call.1} parent=1 // pred_region
      %s26 = ssub.s32 512, 512
      %27 = vsyncadd [#allocation6], %s26
      %s28 = sshll.u32 [#allocation5], 4
      %s29 = int_to_ptr.vmem [resolvable:$true] %s28
      %34 = dma.hbm_to_vmem [thread:$0]  %s1, 512, %s29, [#allocation6], 128, 128, 8
    $region9: #{tpu_custom_call.1} parent=1 // pred_fallthru
      _
    // Predicated region
    $region10: #{tpu_custom_call.1} parent=1 // pred_check
      _
    $region11: #{tpu_custom_call.1} parent=1 // pred_check_branch
      %36 = sbr.rel (0) target = $region13
    $region12: #{tpu_custom_call.1} parent=1 // pred_region
      _
    $region13: #{tpu_custom_call.1} parent=1 // pred_fallthru
      _
    // Predicated region
    $region14: #{tpu_custom_call.1} parent=1 // pred_check
      _
    $region15: #{tpu_custom_call.1} parent=1 // pred_check_branch
      %38 = sbr.rel (0) target = $region17
    $region16: #{tpu_custom_call.1} parent=1 // pred_region
      %s40 = ssub.s32 1024, 1024
      %41 = vsyncadd [#allocation6], %s40
      %s42 = sshll.u32 [#allocation7], 4
      %s43 = int_to_ptr.vmem [resolvable:$true] %s42
      %48 = dma.hbm_to_vmem [thread:$0]  %s3, 1024, %s43, [#allocation6], 128, 128, 8
    $region17: #{tpu_custom_call.1} parent=1 // pred_fallthru
      _
    // Predicated region
    $region18: #{tpu_custom_call.1} parent=1 // pred_check
      _
    $region19: #{tpu_custom_call.1} parent=1 // pred_check_branch
      %50 = sbr.rel (0) target = $region21
    $region20: #{tpu_custom_call.1} parent=1 // pred_region
      _
    $region21: #{tpu_custom_call.1} parent=1 // pred_fallthru
      _
    // Predicated region
    $region22: #{tpu_custom_call.1} parent=1 // pred_check
      _
    $region23: #{tpu_custom_call.1} parent=1 // pred_check_branch
      %52 = sbr.rel (0) target = $region25
    $region24: #{tpu_custom_call.1} parent=1 // pred_region
      %53 = dma.done [#allocation3], 128
    $region25: #{tpu_custom_call.1} parent=1 // pred_fallthru
      _
    // Predicated region
    $region26: #{tpu_custom_call.1} parent=1 // pred_check
      _
    $region27: #{tpu_custom_call.1} parent=1 // pred_check_branch
      %55 = sbr.rel (0) target = $region29
    $region28: #{tpu_custom_call.1} parent=1 // pred_region
      %56 = dma.done [#allocation6], 512
    $region29: #{tpu_custom_call.1} parent=1 // pred_fallthru
      _
    // Predicated region
    $region30: #{tpu_custom_call.1} parent=1 // pred_check
      _
    $region31: #{tpu_custom_call.1} parent=1 // pred_check_branch
      %58 = sbr.rel (0) target = $region33
    $region32: #{tpu_custom_call.1} parent=1 // pred_region
      %59 = dma.done [#allocation6], 1024
    $region33: #{tpu_custom_call.1} parent=1 // pred_fallthru
      _
    %v60 = vld [vmem:[#allocation2] sm:$0xff]
    %v61 = vld [vmem:[#allocation5] sm:$0xff]
    %v62 = vld [vmem:[#allocation5 + $0x8] sm:$0xff]
    %v63 = vld [vmem:[#allocation5 + $0x10] sm:$0xff]
    %v64 = vld [vmem:[#allocation5 + $0x18] sm:$0xff]
    %v65 = vld [vmem:[%s2] sm:$0x1]
    %v67 = vlaneseq
    %v68 = vshrl.u32 %v67, 7
    %v69 = vsub.s32 0, %v68
    %v70 = vrot.slane %v65, %v69
    %vm72 = vcmask 261120
    %v74 = vsel %vm72, %v60, 0
    %76 = vmatprep.subr.mxu0 0.0
    %77 = vmatpush1.msra.mxu0 %v61
    %78 = vmatprep.subr.mxu0 0.0
    %79 = vmatpush1.msra.mxu0 %v62
    %80 = vmatprep.subr.mxu0 0.0
    %81 = vmatpush1.msra.mxu0 %v63
    %82 = vmatprep.subr.mxu0 0.0
    %83 = vmatpush1.msra.mxu0 %v64
    %84 = vmatprep.subr.mxu0 0.0
    %85 = vmatpush1.msra.mxu0 0.0
    %86 = vmatprep.subr.mxu0 0.0
    %87 = vmatpush1.msra.mxu0 0.0
    %88 = vmatprep.subr.mxu0 0.0
    %89 = vmatpush1.msra.mxu0 0.0
    %90 = vmatprep.subr.mxu0 0.0
    %91 = vmatpush1.msra.mxu0 0.0
    %92 = vmatprep.subr.mxu0 0.0
    %93 = vmatpush1.msra.mxu0 0.0
    %94 = vmatprep.subr.mxu0 0.0
    %95 = vmatpush1.msra.mxu0 0.0
    %96 = vmatprep.subr.mxu0 0.0
    %97 = vmatpush1.msra.mxu0 0.0
    %98 = vmatprep.subr.mxu0 0.0
    %99 = vmatpush1.msra.mxu0 0.0
    %100 = vmatprep.subr.mxu0 0.0
    %101 = vmatpush1.msra.mxu0 0.0
    %102 = vmatprep.subr.mxu0 0.0
    %103 = vmatpush1.msra.mxu0 0.0
    %104 = vmatprep.subr.mxu0 0.0
    %105 = vmatpush1.msra.mxu0 0.0
    %106 = vmatprep.subr.mxu0 0.0
    %107 = vmatpush1.msra.mxu0 0.0
    %108 = vmatprep.subr.mxu0 0.0
    %109 = vmatpush1.msra.mxu0 0.0
    %110 = vmatprep.subr.mxu0 0.0
    %111 = vmatpush1.msra.mxu0 0.0
    %112 = vmatprep.subr.mxu0 0.0
    %113 = vmatpush1.msra.mxu0 0.0
    %114 = vmatprep.subr.mxu0 0.0
    %115 = vmatpush1.msra.mxu0 0.0
    %116 = vmatprep.subr.mxu0 0.0
    %117 = vmatpush1.msra.mxu0 0.0
    %118 = vmatprep.subr.mxu0 0.0
    %119 = vmatpush1.msra.mxu0 0.0
    %120 = vmatprep.subr.mxu0 0.0
    %121 = vmatpush1.msra.mxu0 0.0
    %122 = vmatprep.subr.mxu0 0.0
    %123 = vmatpush1.msra.mxu0 0.0
    %124 = vmatprep.subr.mxu0 0.0
    %125 = vmatpush1.msra.mxu0 0.0
    %126 = vmatprep.subr.mxu0 0.0
    %127 = vmatpush1.msra.mxu0 0.0
    %128 = vmatprep.subr.mxu0 0.0
    %129 = vmatpush1.msra.mxu0 0.0
    %130 = vmatprep.subr.mxu0 0.0
    %131 = vmatpush1.msra.mxu0 0.0
    %132 = vmatprep.subr.mxu0 0.0
    %133 = vmatpush1.msra.mxu0 0.0
    %134 = vmatprep.subr.mxu0 0.0
    %135 = vmatpush1.msra.mxu0 0.0
    %136 = vmatprep.subr.mxu0 0.0
    %137 = vmatpush1.msra.mxu0 0.0
    %138 = vmatprep.subr.mxu0 0.0
    %139 = vmatpush1.msra.mxu0 0.0
    %140 = vmatprep.mubr.f32.mxu0 0.0
    %141 = vmatmul.mubr.f32.gmra.mrb[0].mxu0 %v74
    %v142 = vpop.f32.mrb[0].mxu0
    %v143 = vadd.f32 %v70, %v142
    %v144 = vpop.f32.mrb[0].mxu0
    %145 = vdwg.mxu0
    %v146 = vmul.f32 %v143, 0.5
    %v147 = vmul.f32 %v143, 0.70710677
    %v148 = verf.f32.pop %v147
    %v149 = vadd.f32 %v148, 1.0
    %v150 = vmul.f32 %v146, %v149
    %vm151 = vcmask 523264
    %v152 = vsel %vm151, %v150, 0.0
    %153 = vadd.xlane.f32.xlu0 %v152
    %v154 = vpop.xlane.xlu0 %153
    %v155 = vrcp.pop 64.0
    %v156 = vmul.f32 %v154, %v155
    %v157 = vmul.f32 %v150, %v150
    %v158 = vsel %vm151, %v157, 0.0
    %159 = vadd.xlane.f32.xlu0 %v158
    %v160 = vpop.xlane.xlu0 %159
    %v161 = vmul.f32 %v160, %v155
    %v162 = vmul.f32 %v156, %v156
    %v163 = vsub.f32 %v161, %v162
    %v164 = vmax.f32 %v163, 0.0
    %v165 = vsub.f32 %v150, %v156
    %v166 = vadd.f32 %v164, 1e-12
    %v167 = vrsqrt.pop %v166
    %v168 = vmul.f32 %v165, %v167
    %v169 = vld [vmem:[#allocation7] sm:$0xff]
    %v170 = vld [vmem:[#allocation7 + $0x8] sm:$0xff]
    %v171 = vld [vmem:[#allocation7 + $0x10] sm:$0xff]
    %v172 = vld [vmem:[#allocation7 + $0x18] sm:$0xff]
    %v173 = vld [vmem:[#allocation7 + $0x20] sm:$0xff]
    %v174 = vld [vmem:[#allocation7 + $0x28] sm:$0xff]
    %v175 = vld [vmem:[#allocation7 + $0x30] sm:$0xff]
    %v176 = vld [vmem:[#allocation7 + $0x38] sm:$0xff]
    %v177 = vld [vmem:[%s4] sm:$0x1]
    %v179 = vlaneseq
    %v180 = vshrl.u32 %v179, 7
    %v181 = vsub.s32 0, %v180
    %v182 = vrot.slane %v177, %v181
    %v185 = vsel %vm151, %v168, 0
    %187 = vmatprep.subr.mxu0 0.0
    %188 = vmatpush1.msra.mxu0 %v169
    %189 = vmatprep.subr.mxu0 0.0
    %190 = vmatpush1.msra.mxu0 %v170
    %191 = vmatprep.subr.mxu0 0.0
    %192 = vmatpush1.msra.mxu0 %v171
    %193 = vmatprep.subr.mxu0 0.0
    %194 = vmatpush1.msra.mxu0 %v172
    %195 = vmatprep.subr.mxu0 0.0
    %196 = vmatpush1.msra.mxu0 %v173
    %197 = vmatprep.subr.mxu0 0.0
    %198 = vmatpush1.msra.mxu0 %v174
    %199 = vmatprep.subr.mxu0 0.0
    %200 = vmatpush1.msra.mxu0 %v175
    %201 = vmatprep.subr.mxu0 0.0
    %202 = vmatpush1.msra.mxu0 %v176
    %203 = vmatprep.subr.mxu0 0.0
    %204 = vmatpush1.msra.mxu0 0.0
    %205 = vmatprep.subr.mxu0 0.0
    %206 = vmatpush1.msra.mxu0 0.0
    %207 = vmatprep.subr.mxu0 0.0
    %208 = vmatpush1.msra.mxu0 0.0
    %209 = vmatprep.subr.mxu0 0.0
    %210 = vmatpush1.msra.mxu0 0.0
    %211 = vmatprep.subr.mxu0 0.0
    %212 = vmatpush1.msra.mxu0 0.0
    %213 = vmatprep.subr.mxu0 0.0
    %214 = vmatpush1.msra.mxu0 0.0
    %215 = vmatprep.subr.mxu0 0.0
    %216 = vmatpush1.msra.mxu0 0.0
    %217 = vmatprep.subr.mxu0 0.0
    %218 = vmatpush1.msra.mxu0 0.0
    %219 = vmatprep.subr.mxu0 0.0
    %220 = vmatpush1.msra.mxu0 0.0
    %221 = vmatprep.subr.mxu0 0.0
    %222 = vmatpush1.msra.mxu0 0.0
    %223 = vmatprep.subr.mxu0 0.0
    %224 = vmatpush1.msra.mxu0 0.0
    %225 = vmatprep.subr.mxu0 0.0
    %226 = vmatpush1.msra.mxu0 0.0
    %227 = vmatprep.subr.mxu0 0.0
    %228 = vmatpush1.msra.mxu0 0.0
    %229 = vmatprep.subr.mxu0 0.0
    %230 = vmatpush1.msra.mxu0 0.0
    %231 = vmatprep.subr.mxu0 0.0
    %232 = vmatpush1.msra.mxu0 0.0
    %233 = vmatprep.subr.mxu0 0.0
    %234 = vmatpush1.msra.mxu0 0.0
    %235 = vmatprep.subr.mxu0 0.0
    %236 = vmatpush1.msra.mxu0 0.0
    %237 = vmatprep.subr.mxu0 0.0
    %238 = vmatpush1.msra.mxu0 0.0
    %239 = vmatprep.subr.mxu0 0.0
    %240 = vmatpush1.msra.mxu0 0.0
    %241 = vmatprep.subr.mxu0 0.0
    %242 = vmatpush1.msra.mxu0 0.0
    %243 = vmatprep.subr.mxu0 0.0
    %244 = vmatpush1.msra.mxu0 0.0
    %245 = vmatprep.subr.mxu0 0.0
    %246 = vmatpush1.msra.mxu0 0.0
    %247 = vmatprep.subr.mxu0 0.0
    %248 = vmatpush1.msra.mxu0 0.0
    %249 = vmatprep.subr.mxu0 0.0
    %250 = vmatpush1.msra.mxu0 0.0
    %251 = vmatprep.mubr.f32.mxu0 0.0
    %252 = vmatmul.mubr.f32.gmra.mrb[0].mxu0 %v185
    %v253 = vpop.f32.mrb[0].mxu0
    %v254 = vadd.f32 %v182, %v253
    %v255 = vpop.f32.mrb[0].mxu0
    %256 = vdwg.mxu0
    %257 = vst [vmem:[#allocation8] sm:$0xff] %v254
    // Predicated region
    $region34: #{tpu_custom_call.1} parent=1 // pred_check
      _
    $region35: #{tpu_custom_call.1} parent=1 // pred_check_branch
      %259 = sbr.rel (0) target = $region37
    $region36: #{tpu_custom_call.1} parent=1 // pred_region
      %s261 = ssub.s32 128, 128
      %262 = vsyncadd [#allocation4], %s261
      %s264 = sshll.u32 [#allocation8], 4
      %s265 = int_to_ptr.vmem [resolvable:$true] %s264
      %267 = dma.vmem_to_hbm [thread:$0]  %s265, 128, %s5, [#allocation4]
    $region37: #{tpu_custom_call.1} parent=1 // pred_fallthru
      _
    // Predicated region
    $region38: #{tpu_custom_call.1} parent=1 // pred_check
      _
    $region39: #{tpu_custom_call.1} parent=1 // pred_check_branch
      %269 = sbr.rel (0) target = $region41
    $region40: #{tpu_custom_call.1} parent=1 // pred_region
      %270 = dma.done [#allocation4], 128
    $region41: #{tpu_custom_call.1} parent=1 // pred_fallthru
      _
    %271 = vsyncpa [#allocation3], 1
    %272 = vsyncpa [#allocation6], 1
    %273 = vsyncpa [#allocation4], 1

</llo_original>
